<compile_context>
chip_gen: v5e
topology: v5e:2x2
jax: 0.10.0
libtpu: 0.0.40
codegen_flags: <defaults>
</compile_context>

<pallas_src>
import functools

import jax
import jax.numpy as jnp
from jax import lax
from jax.experimental import pallas as pl
from jax.experimental.pallas import tpu as pltpu


def _round_up(x, m):
    return ((x + m - 1) // m) * m


def _sublane_min(dtype):
    # Packed-dtype sublane minimums: f32 -> 8, bf16 -> 16, int8/fp8 -> 32.
    return {4: 8, 2: 16, 1: 32}[jnp.dtype(dtype).itemsize]


def _linear_kernel_bias(x_ref, w_ref, b_ref, o_ref, acc_ref):
    """One (tm, tn) output tile; grid axis 2 reduces over K. With bias."""
    k = pl.program_id(2)

    @pl.when(k == 0)
    def _():
        acc_ref[...] = jnp.zeros_like(acc_ref)

    # x_ref: (tm, tk), w_ref: (tn, tk); contract K directly on the MXU
    # (no materialized transpose of the weight tile).
    acc_ref[...] += lax.dot_general(
        x_ref[...],
        w_ref[...],
        dimension_numbers=(((1,), (1,)), ((), ())),
        preferred_element_type=jnp.float32,
    )

    @pl.when(k == pl.num_programs(2) - 1)
    def _():
        o_ref[...] = (acc_ref[...] + b_ref[...].astype(jnp.float32)).astype(o_ref.dtype)


def _linear_kernel_nobias(x_ref, w_ref, o_ref, acc_ref):
    """Same as above but without the bias epilogue."""
    k = pl.program_id(2)

    @pl.when(k == 0)
    def _():
        acc_ref[...] = jnp.zeros_like(acc_ref)

    acc_ref[...] += lax.dot_general(
        x_ref[...],
        w_ref[...],
        dimension_numbers=(((1,), (1,)), ((), ())),
        preferred_element_type=jnp.float32,
    )

    @pl.when(k == pl.num_programs(2) - 1)
    def _():
        o_ref[...] = acc_ref[...].astype(o_ref.dtype)


@functools.partial(jax.jit, static_argnames=("out_size", "tm_cap", "tn", "tk"))
def _pallas_linear(x, w_padded, b_padded, *, out_size, tm_cap, tn, tk):
    """y = x @ w.T (+ b). `w_padded` is (N_pad, K_pad), pre-padded at init."""
    orig_shape = x.shape
    in_size = orig_shape[-1]
    x2d = x.reshape(-1, in_size)
    M = x2d.shape[0]
    N_pad, K_pad = w_padded.shape

    # M tile: as large as possible up to tm_cap, respecting the sublane
    # minimum for this dtype (8 for f32, 16 for bf16, 32 for int8).
    sub = _sublane_min(x.dtype)
    tm = min(tm_cap, _round_up(M, sub))
    M_pad = _round_up(M, tm)

    # Only x gets padded per call; the (static) weight/bias were padded once.
    if (M_pad != M) or (K_pad != in_size):
        x2d = jnp.pad(x2d, ((0, M_pad - M), (0, K_pad - in_size)))

    grid = (M_pad // tm, N_pad // tn, K_pad // tk)

    # Explicit VMEM budget (double-buffered x/w/out tiles + f32 accumulator),
    # capped below the v7x physical VMEM of 64 MiB.
    itemsize = jnp.dtype(x.dtype).itemsize
    vmem_est = (
        2 * (tm * tk + tn * tk + tm * tn) * itemsize  # double-buffered tiles
        + tm * tn * 4                                 # f32 accumulator scratch
        + 2 * tn * itemsize                           # bias tile
    )
    vmem_limit = int(min(max(2 * vmem_est, 32 * 1024 * 1024), 60 * 1024 * 1024))

    has_bias = b_padded is not None
    kernel = _linear_kernel_bias if has_bias else _linear_kernel_nobias

    in_specs = [
        pl.BlockSpec((tm, tk), lambda i, j, k: (i, k)),  # x tile
        pl.BlockSpec((tn, tk), lambda i, j, k: (j, k)),  # weight tile (N, K)
    ]
    args = [x2d, w_padded]
    if has_bias:
        in_specs.append(pl.BlockSpec((1, tn), lambda i, j, k: (0, j)))  # bias
        args.append(b_padded)

    out = pl.pallas_call(
        kernel,
        out_shape=jax.ShapeDtypeStruct((M_pad, N_pad), x.dtype),
        grid_spec=pltpu.PrefetchScalarGridSpec(
            num_scalar_prefetch=0,
            grid=grid,
            in_specs=in_specs,
            out_specs=pl.BlockSpec((tm, tn), lambda i, j, k: (i, j)),
            scratch_shapes=[pltpu.VMEM((tm, tn), jnp.float32)],
        ),
        compiler_params=pltpu.CompilerParams(
            dimension_semantics=("parallel", "parallel", "arbitrary"),
            vmem_limit_bytes=vmem_limit,
        ),
    )(*args)

    out = out[:M, :out_size]
    return out.reshape(*orig_shape[:-1], out_size)


class LinearBasePallas:
    """JAX/Pallas equivalent of vLLM LinearBase + UnquantizedLinearMethod."""

    def __init__(self, input_size, output_size, bias=True, skip_bias_add=False,
                 params_dtype=jnp.float32, seed=0,
                 tm=256, tn=512, tk=1024):
        self.input_size = input_size
        self.output_size = output_size
        self.skip_bias_add = skip_bias_add
        self.params_dtype = params_dtype

        # Tile sizes (clamped to the padded problem size; all 128-aligned on
        # the lane axis). These defaults fit comfortably in VMEM on
        # v5e / v6e / v7x; sweep per generation for peak perf.
        self.tm_cap = tm
        self.tn = min(tn, _round_up(output_size, 128))
        self.tk = min(tk, _round_up(input_size, 128))
        n_pad = _round_up(output_size, self.tn)
        k_pad = _round_up(input_size, self.tk)

        key = jax.random.PRNGKey(seed)
        wkey, bkey = jax.random.split(key)
        # Deterministic synthetic init; weight layout matches PyTorch (out, in).
        self.weight = (
            jax.random.normal(wkey, (output_size, input_size), dtype=jnp.float32)
            * 0.02
        ).astype(params_dtype)
        # Pad the (static) weight ONCE here instead of on every forward call.
        self.weight_padded = jnp.pad(
            self.weight,
            ((0, n_pad - output_size), (0, k_pad - input_size)),
        )

        if bias:
            self.bias = (
                jax.random.normal(bkey, (output_size,), dtype=jnp.float32) * 0.02
            ).astype(params_dtype)
            self.bias_padded = jnp.pad(
                self.bias.reshape(1, output_size),
                ((0, 0), (0, n_pad - output_size)),
            )
        else:
            self.bias = None
            self.bias_padded = None

    def forward(self, x):
        if self.skip_bias_add:
            y = _pallas_linear(
                x, self.weight_padded, None,
                out_size=self.output_size, tm_cap=self.tm_cap,
                tn=self.tn, tk=self.tk,
            )
            return y, self.bias
        y = _pallas_linear(
            x, self.weight_padded, self.bias_padded,
            out_size=self.output_size, tm_cap=self.tm_cap,
            tn=self.tn, tk=self.tk,
        )
        return y, None

    __call__ = forward


if __name__ == "__main__":
    batch, seq, input_size, output_size = 2, 8, 32, 64

    key = jax.random.PRNGKey(0)
    x = jax.random.normal(key, (batch, seq, input_size), dtype=jnp.float32)

    # Standard path: fused bias add.
    layer = LinearBasePallas(input_size, output_size, bias=True,
                             skip_bias_add=False, seed=0)
    y, maybe_bias = layer(x)
    y = jax.block_until_ready(y)
    assert y.shape == (batch, seq, output_size)
    assert maybe_bias is None
    ref = jnp.einsum("bsk,nk->bsn", x, layer.weight,
                     precision=jax.lax.Precision.HIGHEST) + layer.bias
    assert jnp.allclose(y, ref, atol=1e-4, rtol=1e-4)

    # skip_bias_add path: no-bias kernel variant, bias returned separately.
    layer2 = LinearBasePallas(input_size, output_size, bias=True,
                              skip_bias_add=True, seed=0)
    y2, bias2 = layer2(x)
    y2 = jax.block_until_ready(y2)
    ref2 = jnp.einsum("bsk,nk->bsn", x, layer2.weight,
                      precision=jax.lax.Precision.HIGHEST)
    assert jnp.allclose(y2, ref2, atol=1e-4, rtol=1e-4)
    assert bias2 is not None and bias2.shape == (output_size,)

    # Ragged shapes (M, K, N not multiples of 128) exercise the padding paths.
    in3, out3 = 160, 200
    x3 = jax.random.normal(jax.random.PRNGKey(1), (19, in3), dtype=jnp.float32)
    layer3 = LinearBasePallas(in3, out3, bias=True, skip_bias_add=False, seed=3)
    y3, _ = layer3(x3)
    y3 = jax.block_until_ready(y3)
    ref3 = jnp.einsum("mk,nk->mn", x3, layer3.weight,
                      precision=jax.lax.Precision.HIGHEST) + layer3.bias
    assert y3.shape == (19, out3)
    assert jnp.allclose(y3, ref3, atol=1e-4, rtol=1e-4)

    print("KERNEL_OK")
</pallas_src>

<mosaic_0001>
module attributes {stable_mosaic.version = 11 : i64} {
  func.func @_linear_kernel_bias(%arg0: i32, %arg1: i32, %arg2: i32, %arg3: memref<16x128xf32, #tpu.memory_space<vmem>>, %arg4: memref<128x128xf32, #tpu.memory_space<vmem>>, %arg5: memref<1x128xf32, #tpu.memory_space<vmem>>, %arg6: memref<16x128xf32, #tpu.memory_space<vmem>>, %arg7: memref<16x128xf32, #tpu.memory_space<vmem>>) attributes {dimension_semantics = [#tpu.dimension_semantics<parallel>, #tpu.dimension_semantics<parallel>, #tpu.dimension_semantics<arbitrary>], iteration_bounds = array<i64: 1, 1, 1>, scalar_prefetch = 0 : i64, scratch_operands = 1 : i64, tpu.core_type = #tpu.core_type<tc>, window_params = [{transform_indices = @transform_0, window_bounds = array<i64: 16, 128>}, {transform_indices = @transform_1, window_bounds = array<i64: 128, 128>}, {transform_indices = @transform_2, window_bounds = array<i64: 1, 128>}, {transform_indices = @transform_3, window_bounds = array<i64: 16, 128>}]} {
    %c0_i32 = arith.constant 0 : i32
    %0 = arith.cmpi eq, %arg2, %c0_i32 : i32
    %1 = arith.extui %0 : i1 to i32
    %c0_i32_0 = arith.constant 0 : i32
    %2 = arith.cmpi ne, %1, %c0_i32_0 : i32
    scf.if %2 {
      %cst_10 = arith.constant 0.000000e+00 : f32
      %12 = vector.broadcast %cst_10 : f32 to vector<16x128xf32>
      %c0_11 = arith.constant 0 : index
      %c0_12 = arith.constant 0 : index
      %13 = vector.load %arg7[%c0_11, %c0_12] : memref<16x128xf32, #tpu.memory_space<vmem>>, vector<16x128xf32>
      tpu.vector_store %arg7[%c0_11, %c0_12], %12 {strides = array<i32>} : memref<16x128xf32, #tpu.memory_space<vmem>>, vector<16x128xf32>,
    } else {
    }
    %c0 = arith.constant 0 : index
    %c0_1 = arith.constant 0 : index
    %3 = vector.load %arg7[%c0, %c0_1] : memref<16x128xf32, #tpu.memory_space<vmem>>, vector<16x128xf32>
    %c0_2 = arith.constant 0 : index
    %c0_3 = arith.constant 0 : index
    %4 = vector.load %arg3[%c0_2, %c0_3] : memref<16x128xf32, #tpu.memory_space<vmem>>, vector<16x128xf32>
    %c0_4 = arith.constant 0 : index
    %c0_5 = arith.constant 0 : index
    %5 = vector.load %arg4[%c0_4, %c0_5] : memref<128x128xf32, #tpu.memory_space<vmem>>, vector<128x128xf32>
    %cst = arith.constant dense<0.000000e+00> : vector<16x128xf32>
    %6 = tpu.matmul %4, %5, %cst {dimension_numbers = #tpu.dot_dimension_numbers<[1], [1], [0], [0], [0, 0, 1, 0], [], []>} : vector<16x128xf32>, vector<128x128xf32>, vector<16x128xf32> -> vector<16x128xf32>
    %7 = arith.addf %3, %6 : vector<16x128xf32>
    %c0_6 = arith.constant 0 : index
    %c0_7 = arith.constant 0 : index
    %8 = vector.load %arg7[%c0_6, %c0_7] : memref<16x128xf32, #tpu.memory_space<vmem>>, vector<16x128xf32>
    tpu.vector_store %arg7[%c0_6, %c0_7], %7 {strides = array<i32>} : memref<16x128xf32, #tpu.memory_space<vmem>>, vector<16x128xf32>,
    %c0_i32_8 = arith.constant 0 : i32
    %9 = arith.cmpi eq, %arg2, %c0_i32_8 : i32
    %10 = arith.extui %9 : i1 to i32
    %c0_i32_9 = arith.constant 0 : i32
    %11 = arith.cmpi ne, %10, %c0_i32_9 : i32
    scf.if %11 {
      %c0_10 = arith.constant 0 : index
      %c0_11 = arith.constant 0 : index
      %12 = vector.load %arg7[%c0_10, %c0_11] : memref<16x128xf32, #tpu.memory_space<vmem>>, vector<16x128xf32>
      %c0_12 = arith.constant 0 : index
      %c0_13 = arith.constant 0 : index
      %13 = vector.load %arg5[%c0_12, %c0_13] : memref<1x128xf32, #tpu.memory_space<vmem>>, vector<1x128xf32>
      %14 = vector.broadcast %13 : vector<1x128xf32> to vector<16x128xf32>
      %15 = arith.addf %12, %14 : vector<16x128xf32>
      %c0_14 = arith.constant 0 : index
      %c0_15 = arith.constant 0 : index
      %16 = vector.load %arg6[%c0_14, %c0_15] : memref<16x128xf32, #tpu.memory_space<vmem>>, vector<16x128xf32>
      tpu.vector_store %arg6[%c0_14, %c0_15], %15 {strides = array<i32>} : memref<16x128xf32, #tpu.memory_space<vmem>>, vector<16x128xf32>,
    } else {
    }
    return
  }
  func.func @transform_0(%arg0: i32, %arg1: i32, %arg2: i32) -> (i32, i32) {
    %c0_i32 = arith.constant 0 : i32
    return %arg0, %arg2 : i32, i32
  }
  func.func @transform_1(%arg0: i32, %arg1: i32, %arg2: i32) -> (i32, i32) {
    %c0_i32 = arith.constant 0 : i32
    return %arg1, %arg2 : i32, i32
  }
  func.func @transform_2(%arg0: i32, %arg1: i32, %arg2: i32) -> (i32, i32) {
    %c0_i32 = arith.constant 0 : i32
    %c0_i32_0 = arith.constant 0 : i32
    return %c0_i32, %arg1 : i32, i32
  }
  func.func @transform_3(%arg0: i32, %arg1: i32, %arg2: i32) -> (i32, i32) {
    %c0_i32 = arith.constant 0 : i32
    return %arg0, %arg1 : i32, i32
  }
}

</mosaic_0001>

<llo_original>
// kernel: _pallas_linear.1
$region0: #{_pallas_linear.1}
  #allocation0 [shape = 'u32[]', space=smem, size = 0x4, offset = 0x4, fixed_abs, tag = 'smem constant byte address 0x4 - core index']
  #allocation1 [shape = 'u32[72,128]{1,0:T(1,128)}', space=vmem, size = 0x9000, scoped, tag = 'internal scratch']
  #allocation2 [shape = 'f32[16,128]{1,0:T(8,128)}', space=vmem, size = 0x2000, scoped, tag = 'scratch operand']
  %s0 = inlined_call_operand.vmem [shape: f32[16,128], index: 0, kind: input, shape index: {}]
  %s1 = inlined_call_operand.hbm [shape: f32[128,128], index: 1, kind: input, shape index: {}]
  %s2 = inlined_call_operand.vmem [shape: f32[1,128], index: 2, kind: input, shape index: {}]
  %s3 = inlined_call_operand.vmem [shape: f32[16,128], index: 3, kind: output, shape index: {}]
  %s4 = sld [smem:[#allocation0]]
  $region34: #{_pallas_linear.1} parent=0
    _
  %s6 = ssub.s32 1, %s4
  %s7 = scalar_select 0, %s6, %s4
  $region1: #{_pallas_linear.1} parent=0
    #allocation3 [shape = 'u8[65536]{0}', space=vmem, size = 0x10000, scoped, tag = 'input window, operand 1, single buffered']
    #allocation4 [shape = 's32[1]{0}', space=sflag, size = 0x4, scoped, tag = 'scoped memory for _pallas_linear.1']
    %8 = vsyncpa [#allocation4], 0
    // Predicated region
    $region2: #{_pallas_linear.1} parent=1 // pred_check
      _
    $region3: #{_pallas_linear.1} parent=1 // pred_check_branch
      %10 = sbr.rel (0) target = $region5
    $region4: #{_pallas_linear.1} parent=1 // pred_region
      _
    $region5: #{_pallas_linear.1} parent=1 // pred_fallthru
      _
    // Predicated region
    $region6: #{_pallas_linear.1} parent=1 // pred_check
      _
    $region7: #{_pallas_linear.1} parent=1 // pred_check_branch
      %12 = sbr.rel (0) target = $region9
    $region8: #{_pallas_linear.1} parent=1 // pred_region
      %14 = vsyncadd [#allocation4], 0
      %s15 = sshll.u32 %s1, 4
      %s16 = int_to_ptr.hbm [resolvable:$true] %s15
      %s17 = sshll.u32 [#allocation3], 4
      %s18 = int_to_ptr.vmem [resolvable:$true] %s17
      %23 = dma.hbm_to_vmem [thread:$0]  %s16, 2048, %s18, [#allocation4], 128, 128, 8
    $region9: #{_pallas_linear.1} parent=1 // pred_fallthru
      _
    // Predicated region
    $region10: #{_pallas_linear.1} parent=1 // pred_check
      _
    $region11: #{_pallas_linear.1} parent=1 // pred_check_branch
      %25 = sbr.rel (0) target = $region13
    $region12: #{_pallas_linear.1} parent=1 // pred_region
      _
    $region13: #{_pallas_linear.1} parent=1 // pred_fallthru
      _
    // Predicated region
    $region14: #{_pallas_linear.1} parent=1 // pred_check
      _
    $region15: #{_pallas_linear.1} parent=1 // pred_check_branch
      %27 = sbr.rel (0) target = $region17
    $region16: #{_pallas_linear.1} parent=1 // pred_region
      %29 = dma.done [#allocation4], 2048
    $region17: #{_pallas_linear.1} parent=1 // pred_fallthru
      _
    %p30 = scmp.eq.s32.totalorder 0, 0
    // Predicated region
    $region18: #{_pallas_linear.1} parent=1 // pred_check
      %p31 = pneg %p30
    $region19: #{_pallas_linear.1} parent=1 // pred_check_branch
      %33 = sbr.rel (%p31) target = $region21
    $region20: #{_pallas_linear.1} parent=1 // pred_region
      %34 = vst [vmem:[#allocation2] sm:$0xff] 0.0
      %35 = vst [vmem:[#allocation2 + $0x8] sm:$0xff] 0.0
    $region21: #{_pallas_linear.1} parent=1 // pred_fallthru
      _
    %v36 = vld [vmem:[#allocation2] sm:$0xff]
    %v37 = vld [vmem:[#allocation2 + $0x8] sm:$0xff]
    %v38 = vld [vmem:[%s0] sm:$0xff]
    %v39 = vld [vmem:[%s0 + $0x8] sm:$0xff]
    %v40 = vld [vmem:[#allocation3] sm:$0xff]
    %v41 = vld [vmem:[#allocation3 + $0x8] sm:$0xff]
    %v42 = vld [vmem:[#allocation3 + $0x10] sm:$0xff]
    %v43 = vld [vmem:[#allocation3 + $0x18] sm:$0xff]
    %v44 = vld [vmem:[#allocation3 + $0x20] sm:$0xff]
    %v45 = vld [vmem:[#allocation3 + $0x28] sm:$0xff]
    %v46 = vld [vmem:[#allocation3 + $0x30] sm:$0xff]
    %v47 = vld [vmem:[#allocation3 + $0x38] sm:$0xff]
    %v48 = vld [vmem:[#allocation3 + $0x40] sm:$0xff]
    %v49 = vld [vmem:[#allocation3 + $0x48] sm:$0xff]
    %v50 = vld [vmem:[#allocation3 + $0x50] sm:$0xff]
    %v51 = vld [vmem:[#allocation3 + $0x58] sm:$0xff]
    %v52 = vld [vmem:[#allocation3 + $0x60] sm:$0xff]
    %v53 = vld [vmem:[#allocation3 + $0x68] sm:$0xff]
    %v54 = vld [vmem:[#allocation3 + $0x70] sm:$0xff]
    %v55 = vld [vmem:[#allocation3 + $0x78] sm:$0xff]
    %56 = vmatpush.xpose.msra.mxu0 %v55
    %57 = vmatpush.xpose.msra.mxu0 %v54
    %58 = vmatpush.xpose.msra.mxu0 %v53
    %59 = vmatpush.xpose.msra.mxu0 %v52
    %60 = vmatpush.xpose.msra.mxu0 %v51
    %61 = vmatpush.xpose.msra.mxu0 %v50
    %62 = vmatpush.xpose.msra.mxu0 %v49
    %63 = vmatpush.xpose.msra.mxu0 %v48
    %64 = vmatpush.xpose.msra.mxu0 %v47
    %65 = vmatpush.xpose.msra.mxu0 %v46
    %66 = vmatpush.xpose.msra.mxu0 %v45
    %67 = vmatpush.xpose.msra.mxu0 %v44
    %68 = vmatpush.xpose.msra.mxu0 %v43
    %69 = vmatpush.xpose.msra.mxu0 %v42
    %70 = vmatpush.xpose.msra.mxu0 %v41
    %71 = vmatpush.xpose.msra.mxu0 %v40
    %72 = vmatmul.f32.gmra.mxu0 %v38
    %v73 = vpop.f32.mrf.mxu0
    %v74 = vadd.f32 0.0, %v73
    %75 = vmatmul.f32.gmra.mxu0 %v39
    %v76 = vpop.f32.mrf.mxu0
    %v77 = vadd.f32 0.0, %v76
    %78 = vdwg.mxu0
    %v79 = vadd.f32 %v36, %v74
    %v80 = vadd.f32 %v37, %v77
    %81 = vst [vmem:[#allocation2] sm:$0xff] %v79
    %82 = vst [vmem:[#allocation2 + $0x8] sm:$0xff] %v80
    // Predicated region
    $region22: #{_pallas_linear.1} parent=1 // pred_check
      %p83 = pneg %p30
    $region23: #{_pallas_linear.1} parent=1 // pred_check_branch
      %85 = sbr.rel (%p83) target = $region25
    $region24: #{_pallas_linear.1} parent=1 // pred_region
      %v86 = vld [vmem:[#allocation2] sm:$0xff]
      %v87 = vld [vmem:[#allocation2 + $0x8] sm:$0xff]
      %v88 = vld [vmem:[%s2] sm:$0x1]
      %v90 = vperm.slane %v88, 0
      %v92 = vadd.f32 %v86, %v90
      %v93 = vadd.f32 %v87, %v90
      %94 = vst [vmem:[%s3] sm:$0xff] %v92
      %95 = vst [vmem:[%s3 + $0x8] sm:$0xff] %v93
    $region25: #{_pallas_linear.1} parent=1 // pred_fallthru
      _
    // Predicated region
    $region26: #{_pallas_linear.1} parent=1 // pred_check
      _
    $region27: #{_pallas_linear.1} parent=1 // pred_check_branch
      %97 = sbr.rel (0) target = $region29
    $region28: #{_pallas_linear.1} parent=1 // pred_region
      _
    $region29: #{_pallas_linear.1} parent=1 // pred_fallthru
      _
    // Predicated region
    $region30: #{_pallas_linear.1} parent=1 // pred_check
      _
    $region31: #{_pallas_linear.1} parent=1 // pred_check_branch
      %99 = sbr.rel (0) target = $region33
    $region32: #{_pallas_linear.1} parent=1 // pred_region
      _
    $region33: #{_pallas_linear.1} parent=1 // pred_fallthru
      _
    %100 = vsyncpa [#allocation4], 1

</llo_original>
